<compile_context>
chip_gen: v6e
topology: v6e:2x2x1
jax: 0.10.0
libtpu: 0.0.40
codegen_flags: <defaults>
</compile_context>

<pallas_src>
import jax
import jax.numpy as jnp
from jax.experimental import pallas as pl
from jax.experimental.pallas import tpu as pltpu

LEAKY_SLOPE = 0.2
BN_EPS = 1e-5

# Conservative resident-bytes budget for the gridless (whole-problem-in-VMEM)
# path; sized for the smallest physical VMEM across targets (v7x: 64 MiB) with
# headroom for compiler scratch and double-buffers.
_VMEM_SOFT_BUDGET = 40 * 1024 * 1024


def _bn_lrelu(h, gamma, beta):
    """Training-mode BatchNorm1d fused with LeakyReLU(0.2).

    Two-pass variance (robust to |mu| >> sigma), still a single scale/shift
    FMA per element; rsqrt goes to the EUP (separate bundle slot).
    """
    mu = jnp.mean(h, axis=0, keepdims=True)
    d = h - mu
    var = jnp.mean(d * d, axis=0, keepdims=True)
    scale = gamma * jax.lax.rsqrt(var + BN_EPS)
    h_aff = d * scale + beta
    # LeakyReLU(0.2) as a single mul+max (no compare/select).
    return jnp.maximum(h_aff, LEAKY_SLOPE * h_aff)


def _encoder_kernel(
    x_ref,
    w1_ref, g1_ref, be1_ref,
    w2_ref, g2_ref, be2_ref,
    w3_ref, g3_ref, be3_ref,
    wh_ref, bh_ref,
    out_ref,
):
    # Pre-BN linear biases omitted: they cancel exactly against the batch mean.
    h = jnp.dot(x_ref[...], w1_ref[...], preferred_element_type=jnp.float32)
    h = _bn_lrelu(h, g1_ref[...], be1_ref[...])
    h = jnp.dot(h, w2_ref[...], preferred_element_type=jnp.float32)
    h = _bn_lrelu(h, g2_ref[...], be2_ref[...])
    h = jnp.dot(h, w3_ref[...], preferred_element_type=jnp.float32)
    h = _bn_lrelu(h, g3_ref[...], be3_ref[...])
    # Fused mean|logvar head, zero-padded to a full 128-lane slab -> single
    # unmasked wide store; split into (mean, logvar) in the wrapper.
    out_ref[...] = (
        jnp.dot(h, wh_ref[...], preferred_element_type=jnp.float32) + bh_ref[...]
    )


def _encoder_kernel_ktiled(
    x_ref,        # (B, tk) block of the flattened input
    w1_ref,       # (tk, 8Z) block of the layer-1 weight
    g1_ref, be1_ref,
    w2_ref, g2_ref, be2_ref,
    w3_ref, g3_ref, be3_ref,
    wh_ref, bh_ref,
    out_ref,      # (B, head_cols), written only on the last K step
    acc_ref,      # f32 VMEM scratch (B, 8Z): layer-1 partial sums
):
    k = pl.program_id(0)

    @pl.when(k == 0)
    def _():
        acc_ref[...] = jnp.zeros_like(acc_ref)

    acc_ref[...] += jnp.dot(
        x_ref[...], w1_ref[...], preferred_element_type=jnp.float32
    )

    @pl.when(k == pl.num_programs(0) - 1)
    def _():
        h = _bn_lrelu(acc_ref[...], g1_ref[...], be1_ref[...])
        h = jnp.dot(h, w2_ref[...], preferred_element_type=jnp.float32)
        h = _bn_lrelu(h, g2_ref[...], be2_ref[...])
        h = jnp.dot(h, w3_ref[...], preferred_element_type=jnp.float32)
        h = _bn_lrelu(h, g3_ref[...], be3_ref[...])
        out_ref[...] = (
            jnp.dot(h, wh_ref[...], preferred_element_type=jnp.float32)
            + bh_ref[...]
        )


def init_encoder_params(key, z_size, input_channel, input_height, input_width):
    """Deterministic PyTorch-style (uniform +/- 1/sqrt(fan_in)) initialization.

    Also builds the fused, 128-lane-padded mean|logvar head (wh/bh) ONCE here,
    hoisted out of the per-call forward path.
    """
    d_in = input_channel * input_height * input_width
    dims = [d_in, 8 * z_size, 4 * z_size, 2 * z_size]

    params = {}
    keys = jax.random.split(key, 10)
    k_idx = 0

    def linear(kw, kb, fan_in, fan_out):
        bound = 1.0 / jnp.sqrt(jnp.float32(fan_in))
        w = jax.random.uniform(kw, (fan_in, fan_out), jnp.float32, -bound, bound)
        b = jax.random.uniform(kb, (1, fan_out), jnp.float32, -bound, bound)
        return w, b

    for layer in range(3):
        fan_in, fan_out = dims[layer], dims[layer + 1]
        w, b = linear(keys[k_idx], keys[k_idx + 1], fan_in, fan_out)
        k_idx += 2
        params[f"w{layer + 1}"] = w
        params[f"b{layer + 1}"] = b   # kept for the reference; kernel elides it
        params[f"g{layer + 1}"] = jnp.ones((1, fan_out), jnp.float32)    # BN gamma
        params[f"be{layer + 1}"] = jnp.zeros((1, fan_out), jnp.float32)  # BN beta

    wm, bm = linear(keys[k_idx], keys[k_idx + 1], 2 * z_size, z_size)
    k_idx += 2
    wl, bl = linear(keys[k_idx], keys[k_idx + 1], 2 * z_size, z_size)
    k_idx += 2
    params["wm"], params["bm"] = wm, bm
    params["wl"], params["bl"] = wl, bl

    # Fused mean|logvar head, zero-padded to a 128-lane multiple so the head
    # store in the kernel is one unmasked wide vst (zero columns -> zero outs).
    two_z = 2 * z_size
    head_cols = max(128, ((two_z + 127) // 128) * 128)
    wh = jnp.concatenate([wm, wl], axis=1)
    bh = jnp.concatenate([bm, bl], axis=1)
    params["wh"] = jnp.pad(wh, ((0, 0), (0, head_cols - two_z)))
    params["bh"] = jnp.pad(bh, ((0, 0), (0, head_cols - two_z)))
    return params


def encoder_forward(x_nchw, params, z_size, input_channel, input_height,
                    input_width, *, use_bf16_inputs=False, force_k_tile=None):
    """x_nchw: (B, C, H, W) float32 -> (mean, logvar) each (B, z_size)."""
    B = x_nchw.shape[0]
    d_in = input_channel * input_height * input_width
    h1, h2, h3 = 8 * z_size, 4 * z_size, 2 * z_size
    x_flat = x_nchw.reshape(B, d_in)  # matches torch .view(-1, C*H*W)

    w1 = params["w1"]
    if use_bf16_inputs:
        # Halves the dominant x/w1 HBM traffic (and restores native MXU
        # throughput on v5e).  Only use with tolerances looser than 1e-4.
        x_flat = x_flat.astype(jnp.bfloat16)
        w1 = w1.astype(jnp.bfloat16)

    wh, bh = params["wh"], params["bh"]
    head_cols = wh.shape[1]

    fixed_args = (
        params["g1"], params["be1"],
        params["w2"], params["g2"], params["be2"],
        params["w3"], params["g3"], params["be3"],
        wh, bh,
    )
    nbytes = lambda a: a.size * a.dtype.itemsize
    fixed_bytes = sum(nbytes(a) for a in fixed_args) + 4 * B * head_cols
    full_bytes = fixed_bytes + nbytes(x_flat) + nbytes(w1)

    out_shape = jax.ShapeDtypeStruct((B, head_cols), jnp.float32)

    if force_k_tile is None and full_bytes <= _VMEM_SOFT_BUDGET:
        # ---- Gridless fast path: whole problem resident in VMEM, one call ----
        vmem_limit = min(max(2 * full_bytes + (4 << 20), 32 << 20), 128 << 20)
        vmem_spec = pl.BlockSpec(memory_space=pltpu.MemorySpace.VMEM)
        out = pl.pallas_call(
            _encoder_kernel,
            out_shape=out_shape,
            in_specs=[vmem_spec] * 12,
            out_specs=vmem_spec,
            compiler_params=pltpu.CompilerParams(vmem_limit_bytes=vmem_limit),
        )(x_flat, w1, *fixed_args)
    else:
        # ---- Scale-proof path: tile only the layer-1 contraction (d_in) ----
        # Batch axis stays whole, so training-mode BN statistics and the
        # bias elision remain exact.
        if force_k_tile is not None:
            tk = int(force_k_tile)
        else:
            per_k = 2 * (B + h1) * x_flat.dtype.itemsize  # double-buffered x col + w1 row
            tk = max(128, ((_VMEM_SOFT_BUDGET - fixed_bytes) // per_k) // 128 * 128)
        tk = min(tk, ((d_in + 127) // 128) * 128)
        d_pad = pl.cdiv(d_in, tk) * tk
        if d_pad != d_in:
            # Zero-padding the contraction dim contributes exact zeros.
            x_flat = jnp.pad(x_flat, ((0, 0), (0, d_pad - d_in)))
            w1 = jnp.pad(w1, ((0, d_pad - d_in), (0, 0)))
        num_k = d_pad // tk

        tile_bytes = 2 * (B * tk + tk * h1) * x_flat.dtype.itemsize
        vmem_limit = min(
            max(fixed_bytes + tile_bytes + 4 * B * h1 + (4 << 20), 32 << 20),
            128 << 20,
        )

        grid_spec = pltpu.PrefetchScalarGridSpec(
            num_scalar_prefetch=0,
            grid=(num_k,),
            in_specs=[
                pl.BlockSpec((B, tk), lambda k: (0, k)),          # x
                pl.BlockSpec((tk, h1), lambda k: (k, 0)),         # w1
                pl.BlockSpec((1, h1), lambda k: (0, 0)),          # g1
                pl.BlockSpec((1, h1), lambda k: (0, 0)),          # be1
                pl.BlockSpec((h1, h2), lambda k: (0, 0)),         # w2
                pl.BlockSpec((1, h2), lambda k: (0, 0)),          # g2
                pl.BlockSpec((1, h2), lambda k: (0, 0)),          # be2
                pl.BlockSpec((h2, h3), lambda k: (0, 0)),         # w3
                pl.BlockSpec((1, h3), lambda k: (0, 0)),          # g3
                pl.BlockSpec((1, h3), lambda k: (0, 0)),          # be3
                pl.BlockSpec((h3, head_cols), lambda k: (0, 0)),  # wh
                pl.BlockSpec((1, head_cols), lambda k: (0, 0)),   # bh
            ],
            out_specs=pl.BlockSpec((B, head_cols), lambda k: (0, 0)),
            scratch_shapes=[pltpu.VMEM((B, h1), jnp.float32)],
        )
        out = pl.pallas_call(
            _encoder_kernel_ktiled,
            out_shape=out_shape,
            grid_spec=grid_spec,
            compiler_params=pltpu.CompilerParams(
                dimension_semantics=("arbitrary",),
                vmem_limit_bytes=vmem_limit,
            ),
        )(x_flat, w1, *fixed_args)

    mean = out[:, :z_size]
    logvar = out[:, z_size:2 * z_size]
    return mean, logvar


def _reference_forward(x_nchw, params, z_size, C, H, W):
    """Pure-JAX reference (mirrors PyTorch training-mode forward)."""
    B = x_nchw.shape[0]
    h = x_nchw.reshape(B, C * H * W)

    def bn_lrelu(h, g, b):
        mu = jnp.mean(h, axis=0, keepdims=True)
        var = jnp.mean((h - mu) ** 2, axis=0, keepdims=True)
        hn = (h - mu) / jnp.sqrt(var + BN_EPS)
        hn = hn * g + b
        return jnp.where(hn >= 0, hn, LEAKY_SLOPE * hn)

    for i in (1, 2, 3):
        h = h @ params[f"w{i}"] + params[f"b{i}"]
        h = bn_lrelu(h, params[f"g{i}"], params[f"be{i}"])
    mean = h @ params["wm"] + params["bm"]
    logvar = h @ params["wl"] + params["bl"]
    return mean, logvar


if __name__ == "__main__":
    # Small shapes consistent with the module's forward (BN needs B > 1).
    B, C, H, W = 8, 4, 16, 16
    Z = 16  # z_size -> hidden dims 128, 64, 32; d_in = 1024

    key = jax.random.PRNGKey(0)
    kx, kp = jax.random.split(key)
    x = jax.random.normal(kx, (B, C, H, W), dtype=jnp.float32)
    params = init_encoder_params(kp, Z, C, H, W)

    ref_mean, ref_logvar = _reference_forward(x, params, Z, C, H, W)

    # Fast path: gridless, whole problem in VMEM.
    mean, logvar = encoder_forward(x, params, Z, C, H, W)
    mean = jax.block_until_ready(mean)
    logvar = jax.block_until_ready(logvar)
    assert mean.shape == (B, Z) and logvar.shape == (B, Z)
    assert jnp.allclose(mean, ref_mean, atol=1e-4, rtol=1e-4)
    assert jnp.allclose(logvar, ref_logvar, atol=1e-4, rtol=1e-4)

    # Scale-proof path: exercise the K-tiled contraction grid at small shapes
    # to validate it produces identical numerics (batch axis stays whole).
    mean_k, logvar_k = encoder_forward(x, params, Z, C, H, W, force_k_tile=256)
    mean_k = jax.block_until_ready(mean_k)
    logvar_k = jax.block_until_ready(logvar_k)
    assert jnp.allclose(mean_k, ref_mean, atol=1e-4, rtol=1e-4)
    assert jnp.allclose(logvar_k, ref_logvar, atol=1e-4, rtol=1e-4)

    print("KERNEL_OK")
</pallas_src>

<mosaic_0001>
module attributes {stable_mosaic.version = 11 : i64} {
  func.func @_encoder_kernel(%arg0: memref<8x1024xf32, #tpu.memory_space<vmem>>, %arg1: memref<1024x128xf32, #tpu.memory_space<vmem>>, %arg2: memref<1x128xf32, #tpu.memory_space<vmem>>, %arg3: memref<1x128xf32, #tpu.memory_space<vmem>>, %arg4: memref<128x64xf32, #tpu.memory_space<vmem>>, %arg5: memref<1x64xf32, #tpu.memory_space<vmem>>, %arg6: memref<1x64xf32, #tpu.memory_space<vmem>>, %arg7: memref<64x32xf32, #tpu.memory_space<vmem>>, %arg8: memref<1x32xf32, #tpu.memory_space<vmem>>, %arg9: memref<1x32xf32, #tpu.memory_space<vmem>>, %arg10: memref<32x128xf32, #tpu.memory_space<vmem>>, %arg11: memref<1x128xf32, #tpu.memory_space<vmem>>, %arg12: memref<8x128xf32, #tpu.memory_space<vmem>>) attributes {dimension_semantics = [], scalar_prefetch = 0 : i64, scratch_operands = 0 : i64, tpu.core_type = #tpu.core_type<tc>} {
    %c0 = arith.constant 0 : index
    %c0_0 = arith.constant 0 : index
    %0 = vector.load %arg0[%c0, %c0_0] : memref<8x1024xf32, #tpu.memory_space<vmem>>, vector<8x1024xf32>
    %c0_1 = arith.constant 0 : index
    %c0_2 = arith.constant 0 : index
    %1 = vector.load %arg1[%c0_1, %c0_2] : memref<1024x128xf32, #tpu.memory_space<vmem>>, vector<1024x128xf32>
    %cst = arith.constant dense<0.000000e+00> : vector<8x128xf32>
    %2 = tpu.matmul %0, %1, %cst {dimension_numbers = #tpu.dot_dimension_numbers<[1], [0], [0], [1], [0, 0, 1, 1], [], []>} : vector<8x1024xf32>, vector<1024x128xf32>, vector<8x128xf32> -> vector<8x128xf32>
    %c0_3 = arith.constant 0 : index
    %c0_4 = arith.constant 0 : index
    %3 = vector.load %arg2[%c0_3, %c0_4] : memref<1x128xf32, #tpu.memory_space<vmem>>, vector<1x128xf32>
    %c0_5 = arith.constant 0 : index
    %c0_6 = arith.constant 0 : index
    %4 = vector.load %arg3[%c0_5, %c0_6] : memref<1x128xf32, #tpu.memory_space<vmem>>, vector<1x128xf32>
    %cst_7 = arith.constant dense<0.000000e+00> : vector<128xf32>
    %5 = vector.multi_reduction <add>, %2, %cst_7 [0] : vector<8x128xf32> to vector<128xf32>
    %6 = vector.shape_cast %5 : vector<128xf32> to vector<1x128xf32>
    %cst_8 = arith.constant 8.000000e+00 : f32
    %7 = vector.broadcast %cst_8 : f32 to vector<1x128xf32>
    %8 = arith.divf %6, %7 : vector<1x128xf32>
    %9 = vector.broadcast %8 : vector<1x128xf32> to vector<8x128xf32>
    %10 = arith.subf %2, %9 : vector<8x128xf32>
    %11 = arith.mulf %10, %10 : vector<8x128xf32>
    %cst_9 = arith.constant dense<0.000000e+00> : vector<128xf32>
    %12 = vector.multi_reduction <add>, %11, %cst_9 [0] : vector<8x128xf32> to vector<128xf32>
    %13 = vector.shape_cast %12 : vector<128xf32> to vector<1x128xf32>
    %cst_10 = arith.constant 8.000000e+00 : f32
    %14 = vector.broadcast %cst_10 : f32 to vector<1x128xf32>
    %15 = arith.divf %13, %14 : vector<1x128xf32>
    %cst_11 = arith.constant 9.99999974E-6 : f32
    %16 = vector.broadcast %cst_11 : f32 to vector<1x128xf32>
    %17 = arith.addf %15, %16 : vector<1x128xf32>
    %18 = math.rsqrt %17 : vector<1x128xf32>
    %19 = arith.mulf %3, %18 : vector<1x128xf32>
    %20 = vector.broadcast %19 : vector<1x128xf32> to vector<8x128xf32>
    %21 = arith.mulf %10, %20 : vector<8x128xf32>
    %22 = vector.broadcast %4 : vector<1x128xf32> to vector<8x128xf32>
    %23 = arith.addf %21, %22 : vector<8x128xf32>
    %cst_12 = arith.constant 2.000000e-01 : f32
    %24 = vector.broadcast %cst_12 : f32 to vector<8x128xf32>
    %25 = arith.mulf %24, %23 : vector<8x128xf32>
    %26 = arith.maximumf %23, %25 : vector<8x128xf32>
    %c0_13 = arith.constant 0 : index
    %c0_14 = arith.constant 0 : index
    %27 = vector.load %arg4[%c0_13, %c0_14] : memref<128x64xf32, #tpu.memory_space<vmem>>, vector<128x64xf32>
    %cst_15 = arith.constant dense<0.000000e+00> : vector<8x64xf32>
    %28 = tpu.matmul %26, %27, %cst_15 {dimension_numbers = #tpu.dot_dimension_numbers<[1], [0], [0], [1], [0, 0, 1, 1], [], []>} : vector<8x128xf32>, vector<128x64xf32>, vector<8x64xf32> -> vector<8x64xf32>
    %c0_16 = arith.constant 0 : index
    %c0_17 = arith.constant 0 : index
    %29 = vector.load %arg5[%c0_16, %c0_17] : memref<1x64xf32, #tpu.memory_space<vmem>>, vector<1x64xf32>
    %c0_18 = arith.constant 0 : index
    %c0_19 = arith.constant 0 : index
    %30 = vector.load %arg6[%c0_18, %c0_19] : memref<1x64xf32, #tpu.memory_space<vmem>>, vector<1x64xf32>
    %cst_20 = arith.constant dense<0.000000e+00> : vector<64xf32>
    %31 = vector.multi_reduction <add>, %28, %cst_20 [0] : vector<8x64xf32> to vector<64xf32>
    %32 = vector.shape_cast %31 : vector<64xf32> to vector<1x64xf32>
    %cst_21 = arith.constant 8.000000e+00 : f32
    %33 = vector.broadcast %cst_21 : f32 to vector<1x64xf32>
    %34 = arith.divf %32, %33 : vector<1x64xf32>
    %35 = vector.broadcast %34 : vector<1x64xf32> to vector<8x64xf32>
    %36 = arith.subf %28, %35 : vector<8x64xf32>
    %37 = arith.mulf %36, %36 : vector<8x64xf32>
    %cst_22 = arith.constant dense<0.000000e+00> : vector<64xf32>
    %38 = vector.multi_reduction <add>, %37, %cst_22 [0] : vector<8x64xf32> to vector<64xf32>
    %39 = vector.shape_cast %38 : vector<64xf32> to vector<1x64xf32>
    %cst_23 = arith.constant 8.000000e+00 : f32
    %40 = vector.broadcast %cst_23 : f32 to vector<1x64xf32>
    %41 = arith.divf %39, %40 : vector<1x64xf32>
    %cst_24 = arith.constant 9.99999974E-6 : f32
    %42 = vector.broadcast %cst_24 : f32 to vector<1x64xf32>
    %43 = arith.addf %41, %42 : vector<1x64xf32>
    %44 = math.rsqrt %43 : vector<1x64xf32>
    %45 = arith.mulf %29, %44 : vector<1x64xf32>
    %46 = vector.broadcast %45 : vector<1x64xf32> to vector<8x64xf32>
    %47 = arith.mulf %36, %46 : vector<8x64xf32>
    %48 = vector.broadcast %30 : vector<1x64xf32> to vector<8x64xf32>
    %49 = arith.addf %47, %48 : vector<8x64xf32>
    %cst_25 = arith.constant 2.000000e-01 : f32
    %50 = vector.broadcast %cst_25 : f32 to vector<8x64xf32>
    %51 = arith.mulf %50, %49 : vector<8x64xf32>
    %52 = arith.maximumf %49, %51 : vector<8x64xf32>
    %c0_26 = arith.constant 0 : index
    %c0_27 = arith.constant 0 : index
    %53 = vector.load %arg7[%c0_26, %c0_27] : memref<64x32xf32, #tpu.memory_space<vmem>>, vector<64x32xf32>
    %cst_28 = arith.constant dense<0.000000e+00> : vector<8x32xf32>
    %54 = tpu.matmul %52, %53, %cst_28 {dimension_numbers = #tpu.dot_dimension_numbers<[1], [0], [0], [1], [0, 0, 1, 1], [], []>} : vector<8x64xf32>, vector<64x32xf32>, vector<8x32xf32> -> vector<8x32xf32>
    %c0_29 = arith.constant 0 : index
    %c0_30 = arith.constant 0 : index
    %55 = vector.load %arg8[%c0_29, %c0_30] : memref<1x32xf32, #tpu.memory_space<vmem>>, vector<1x32xf32>
    %c0_31 = arith.constant 0 : index
    %c0_32 = arith.constant 0 : index
    %56 = vector.load %arg9[%c0_31, %c0_32] : memref<1x32xf32, #tpu.memory_space<vmem>>, vector<1x32xf32>
    %cst_33 = arith.constant dense<0.000000e+00> : vector<32xf32>
    %57 = vector.multi_reduction <add>, %54, %cst_33 [0] : vector<8x32xf32> to vector<32xf32>
    %58 = vector.shape_cast %57 : vector<32xf32> to vector<1x32xf32>
    %cst_34 = arith.constant 8.000000e+00 : f32
    %59 = vector.broadcast %cst_34 : f32 to vector<1x32xf32>
    %60 = arith.divf %58, %59 : vector<1x32xf32>
    %61 = vector.broadcast %60 : vector<1x32xf32> to vector<8x32xf32>
    %62 = arith.subf %54, %61 : vector<8x32xf32>
    %63 = arith.mulf %62, %62 : vector<8x32xf32>
    %cst_35 = arith.constant dense<0.000000e+00> : vector<32xf32>
    %64 = vector.multi_reduction <add>, %63, %cst_35 [0] : vector<8x32xf32> to vector<32xf32>
    %65 = vector.shape_cast %64 : vector<32xf32> to vector<1x32xf32>
    %cst_36 = arith.constant 8.000000e+00 : f32
    %66 = vector.broadcast %cst_36 : f32 to vector<1x32xf32>
    %67 = arith.divf %65, %66 : vector<1x32xf32>
    %cst_37 = arith.constant 9.99999974E-6 : f32
    %68 = vector.broadcast %cst_37 : f32 to vector<1x32xf32>
    %69 = arith.addf %67, %68 : vector<1x32xf32>
    %70 = math.rsqrt %69 : vector<1x32xf32>
    %71 = arith.mulf %55, %70 : vector<1x32xf32>
    %72 = vector.broadcast %71 : vector<1x32xf32> to vector<8x32xf32>
    %73 = arith.mulf %62, %72 : vector<8x32xf32>
    %74 = vector.broadcast %56 : vector<1x32xf32> to vector<8x32xf32>
    %75 = arith.addf %73, %74 : vector<8x32xf32>
    %cst_38 = arith.constant 2.000000e-01 : f32
    %76 = vector.broadcast %cst_38 : f32 to vector<8x32xf32>
    %77 = arith.mulf %76, %75 : vector<8x32xf32>
    %78 = arith.maximumf %75, %77 : vector<8x32xf32>
    %c0_39 = arith.constant 0 : index
    %c0_40 = arith.constant 0 : index
    %79 = vector.load %arg10[%c0_39, %c0_40] : memref<32x128xf32, #tpu.memory_space<vmem>>, vector<32x128xf32>
    %cst_41 = arith.constant dense<0.000000e+00> : vector<8x128xf32>
    %80 = tpu.matmul %78, %79, %cst_41 {dimension_numbers = #tpu.dot_dimension_numbers<[1], [0], [0], [1], [0, 0, 1, 1], [], []>} : vector<8x32xf32>, vector<32x128xf32>, vector<8x128xf32> -> vector<8x128xf32>
    %c0_42 = arith.constant 0 : index
    %c0_43 = arith.constant 0 : index
    %81 = vector.load %arg11[%c0_42, %c0_43] : memref<1x128xf32, #tpu.memory_space<vmem>>, vector<1x128xf32>
    %82 = vector.broadcast %81 : vector<1x128xf32> to vector<8x128xf32>
    %83 = arith.addf %80, %82 : vector<8x128xf32>
    %c0_44 = arith.constant 0 : index
    %c0_45 = arith.constant 0 : index
    %84 = vector.load %arg12[%c0_44, %c0_45] : memref<8x128xf32, #tpu.memory_space<vmem>>, vector<8x128xf32>
    tpu.vector_store %arg12[%c0_44, %c0_45], %83 {strides = array<i32>} : memref<8x128xf32, #tpu.memory_space<vmem>>, vector<8x128xf32>,
    return
  }
}

</mosaic_0001>

<llo_original>
// kernel: tpu_custom_call.1
$region0: #{tpu_custom_call.1}
  #allocation0 [shape = 'u32[]', space=smem, size = 0x4, offset = 0x4, fixed_abs, tag = 'smem constant byte address 0x4 - core index']
  #allocation1 [shape = 'u32[144,128]{1,0:T(1,128)}', space=vmem, size = 0x12000, scoped, tag = 'internal scratch']
  %s0 = inlined_call_operand.vmem [shape: f32[8,1024], index: 0, kind: input, shape index: {}]
  %s1 = inlined_call_operand.hbm [shape: f32[1024,128], index: 1, kind: input, shape index: {}]
  %s2 = inlined_call_operand.vmem [shape: f32[1,128], index: 2, kind: input, shape index: {}]
  %s3 = inlined_call_operand.vmem [shape: f32[1,128], index: 3, kind: input, shape index: {}]
  %s4 = inlined_call_operand.vmem [shape: f32[128,64], index: 4, kind: input, shape index: {}]
  %s5 = inlined_call_operand.vmem [shape: f32[1,64], index: 5, kind: input, shape index: {}]
  %s6 = inlined_call_operand.vmem [shape: f32[1,64], index: 6, kind: input, shape index: {}]
  %s7 = inlined_call_operand.vmem [shape: f32[64,32], index: 7, kind: input, shape index: {}]
  %s8 = inlined_call_operand.vmem [shape: f32[1,32], index: 8, kind: input, shape index: {}]
  %s9 = inlined_call_operand.vmem [shape: f32[1,32], index: 9, kind: input, shape index: {}]
  %s10 = inlined_call_operand.vmem [shape: f32[32,128], index: 10, kind: input, shape index: {}]
  %s11 = inlined_call_operand.vmem [shape: f32[1,128], index: 11, kind: input, shape index: {}]
  %s12 = inlined_call_operand.hbm [shape: f32[8,128], index: 12, kind: output, shape index: {}]
  %s13 = sld [smem:[#allocation0]]
  $region62: #{tpu_custom_call.1} parent=0
    _
  %s15 = ssub.s32 1, %s13
  %s16 = scalar_select 0, %s15, %s13
  $region1: #{tpu_custom_call.1} parent=0
    #allocation2 [shape = 'u8[524288]{0}', space=vmem, size = 0x80000, scoped, tag = 'input window, operand 1, single buffered']
    #allocation3 [shape = 's32[1]{0}', space=sflag, size = 0x4, scoped, tag = 'scoped memory for tpu_custom_call.1']
    #allocation4 [shape = 's32[1]{0}', space=sflag, size = 0x4, scoped, tag = 'scoped memory for tpu_custom_call.1']
    #allocation5 [shape = 'u8[4096]{0}', space=vmem, size = 0x1000, scoped, tag = 'output window, operand 0, single buffered']
    %17 = vsyncpa [#allocation3], 0
    %18 = vsyncpa [#allocation4], 0
    // Predicated region
    $region2: #{tpu_custom_call.1} parent=1 // pred_check
      _
    $region3: #{tpu_custom_call.1} parent=1 // pred_check_branch
      %20 = sbr.rel (0) target = $region5
    $region4: #{tpu_custom_call.1} parent=1 // pred_region
      _
    $region5: #{tpu_custom_call.1} parent=1 // pred_fallthru
      _
    // Predicated region
    $region6: #{tpu_custom_call.1} parent=1 // pred_check
      _
    $region7: #{tpu_custom_call.1} parent=1 // pred_check_branch
      %22 = sbr.rel (0) target = $region9
    $region8: #{tpu_custom_call.1} parent=1 // pred_region
      %s24 = ssub.s32 16384, 16384
      %25 = vsyncadd [#allocation3], %s24
      %s26 = sshll.u32 [#allocation2], 4
      %s27 = int_to_ptr.vmem [resolvable:$true] %s26
      %32 = dma.hbm_to_vmem [thread:$0]  %s1, 16384, %s27, [#allocation3], 128, 128, 8
    $region9: #{tpu_custom_call.1} parent=1 // pred_fallthru
      _
    // Predicated region
    $region10: #{tpu_custom_call.1} parent=1 // pred_check
      _
    $region11: #{tpu_custom_call.1} parent=1 // pred_check_branch
      %34 = sbr.rel (0) target = $region13
    $region12: #{tpu_custom_call.1} parent=1 // pred_region
      _
    $region13: #{tpu_custom_call.1} parent=1 // pred_fallthru
      _
    // Predicated region
    $region14: #{tpu_custom_call.1} parent=1 // pred_check
      _
    $region15: #{tpu_custom_call.1} parent=1 // pred_check_branch
      %36 = sbr.rel (0) target = $region17
    $region16: #{tpu_custom_call.1} parent=1 // pred_region
      _
    $region17: #{tpu_custom_call.1} parent=1 // pred_fallthru
      _
    // Predicated region
    $region18: #{tpu_custom_call.1} parent=1 // pred_check
      _
    $region19: #{tpu_custom_call.1} parent=1 // pred_check_branch
      %38 = sbr.rel (0) target = $region21
    $region20: #{tpu_custom_call.1} parent=1 // pred_region
      _
    $region21: #{tpu_custom_call.1} parent=1 // pred_fallthru
      _
    // Predicated region
    $region22: #{tpu_custom_call.1} parent=1 // pred_check
      _
    $region23: #{tpu_custom_call.1} parent=1 // pred_check_branch
      %40 = sbr.rel (0) target = $region25
    $region24: #{tpu_custom_call.1} parent=1 // pred_region
      _
    $region25: #{tpu_custom_call.1} parent=1 // pred_fallthru
      _
    // Predicated region
    $region26: #{tpu_custom_call.1} parent=1 // pred_check
      _
    $region27: #{tpu_custom_call.1} parent=1 // pred_check_branch
      %42 = sbr.rel (0) target = $region29
    $region28: #{tpu_custom_call.1} parent=1 // pred_region
      _
    $region29: #{tpu_custom_call.1} parent=1 // pred_fallthru
      _
    // Predicated region
    $region30: #{tpu_custom_call.1} parent=1 // pred_check
      _
    $region31: #{tpu_custom_call.1} parent=1 // pred_check_branch
      %44 = sbr.rel (0) target = $region33
    $region32: #{tpu_custom_call.1} parent=1 // pred_region
      _
    $region33: #{tpu_custom_call.1} parent=1 // pred_fallthru
      _
    // Predicated region
    $region34: #{tpu_custom_call.1} parent=1 // pred_check
      _
    $region35: #{tpu_custom_call.1} parent=1 // pred_check_branch
      %46 = sbr.rel (0) target = $region37
    $region36: #{tpu_custom_call.1} parent=1 // pred_region
      _
    $region37: #{tpu_custom_call.1} parent=1 // pred_fallthru
      _
    // Predicated region
    $region38: #{tpu_custom_call.1} parent=1 // pred_check
      _
    $region39: #{tpu_custom_call.1} parent=1 // pred_check_branch
      %48 = sbr.rel (0) target = $region41
    $region40: #{tpu_custom_call.1} parent=1 // pred_region
      _
    $region41: #{tpu_custom_call.1} parent=1 // pred_fallthru
      _
    // Predicated region
    $region42: #{tpu_custom_call.1} parent=1 // pred_check
      _
    $region43: #{tpu_custom_call.1} parent=1 // pred_check_branch
      %50 = sbr.rel (0) target = $region45
    $region44: #{tpu_custom_call.1} parent=1 // pred_region
      _
    $region45: #{tpu_custom_call.1} parent=1 // pred_fallthru
      _
    // Predicated region
    $region46: #{tpu_custom_call.1} parent=1 // pred_check
      _
    $region47: #{tpu_custom_call.1} parent=1 // pred_check_branch
      %52 = sbr.rel (0) target = $region49
    $region48: #{tpu_custom_call.1} parent=1 // pred_region
      _
    $region49: #{tpu_custom_call.1} parent=1 // pred_fallthru
      _
    // Predicated region
    $region50: #{tpu_custom_call.1} parent=1 // pred_check
      _
    $region51: #{tpu_custom_call.1} parent=1 // pred_check_branch
      %54 = sbr.rel (0) target = $region53
    $region52: #{tpu_custom_call.1} parent=1 // pred_region
      %55 = dma.done [#allocation3], 16384
    $region53: #{tpu_custom_call.1} parent=1 // pred_fallthru
      _
    %v56 = vld [vmem:[%s0] sm:$0xff]
    %v57 = vld [vmem:[%s0 + $0x8] sm:$0xff]
    %v58 = vld [vmem:[%s0 + $0x10] sm:$0xff]
    %v59 = vld [vmem:[%s0 + $0x18] sm:$0xff]
    %v60 = vld [vmem:[%s0 + $0x20] sm:$0xff]
    %v61 = vld [vmem:[%s0 + $0x28] sm:$0xff]
    %v62 = vld [vmem:[%s0 + $0x30] sm:$0xff]
    %v63 = vld [vmem:[%s0 + $0x38] sm:$0xff]
    %v64 = vld [vmem:[#allocation2] sm:$0xff]
    %v65 = vld [vmem:[#allocation2 + $0x8] sm:$0xff]
    %v66 = vld [vmem:[#allocation2 + $0x10] sm:$0xff]
    %v67 = vld [vmem:[#allocation2 + $0x18] sm:$0xff]
    %v68 = vld [vmem:[#allocation2 + $0x20] sm:$0xff]
    %v69 = vld [vmem:[#allocation2 + $0x28] sm:$0xff]
    %v70 = vld [vmem:[#allocation2 + $0x30] sm:$0xff]
    %v71 = vld [vmem:[#allocation2 + $0x38] sm:$0xff]
    %v72 = vld [vmem:[#allocation2 + $0x40] sm:$0xff]
    %v73 = vld [vmem:[#allocation2 + $0x48] sm:$0xff]
    %v74 = vld [vmem:[#allocation2 + $0x50] sm:$0xff]
    %v75 = vld [vmem:[#allocation2 + $0x58] sm:$0xff]
    %v76 = vld [vmem:[#allocation2 + $0x60] sm:$0xff]
    %v77 = vld [vmem:[#allocation2 + $0x68] sm:$0xff]
    %v78 = vld [vmem:[#allocation2 + $0x70] sm:$0xff]
    %v79 = vld [vmem:[#allocation2 + $0x78] sm:$0xff]
    %v80 = vld [vmem:[#allocation2 + $0x80] sm:$0xff]
    %v81 = vld [vmem:[#allocation2 + $0x88] sm:$0xff]
    %v82 = vld [vmem:[#allocation2 + $0x90] sm:$0xff]
    %v83 = vld [vmem:[#allocation2 + $0x98] sm:$0xff]
    %v84 = vld [vmem:[#allocation2 + $0xa0] sm:$0xff]
    %v85 = vld [vmem:[#allocation2 + $0xa8] sm:$0xff]
    %v86 = vld [vmem:[#allocation2 + $0xb0] sm:$0xff]
    %v87 = vld [vmem:[#allocation2 + $0xb8] sm:$0xff]
    %v88 = vld [vmem:[#allocation2 + $0xc0] sm:$0xff]
    %v89 = vld [vmem:[#allocation2 + $0xc8] sm:$0xff]
    %v90 = vld [vmem:[#allocation2 + $0xd0] sm:$0xff]
    %v91 = vld [vmem:[#allocation2 + $0xd8] sm:$0xff]
    %v92 = vld [vmem:[#allocation2 + $0xe0] sm:$0xff]
    %v93 = vld [vmem:[#allocation2 + $0xe8] sm:$0xff]
    %v94 = vld [vmem:[#allocation2 + $0xf0] sm:$0xff]
    %v95 = vld [vmem:[#allocation2 + $0xf8] sm:$0xff]
    %v96 = vld [vmem:[#allocation2 + $0x100] sm:$0xff]
    %v97 = vld [vmem:[#allocation2 + $0x108] sm:$0xff]
    %v98 = vld [vmem:[#allocation2 + $0x110] sm:$0xff]
    %v99 = vld [vmem:[#allocation2 + $0x118] sm:$0xff]
    %v100 = vld [vmem:[#allocation2 + $0x120] sm:$0xff]
    %v101 = vld [vmem:[#allocation2 + $0x128] sm:$0xff]
    %v102 = vld [vmem:[#allocation2 + $0x130] sm:$0xff]
    %v103 = vld [vmem:[#allocation2 + $0x138] sm:$0xff]
    %v104 = vld [vmem:[#allocation2 + $0x140] sm:$0xff]
    %v105 = vld [vmem:[#allocation2 + $0x148] sm:$0xff]
    %v106 = vld [vmem:[#allocation2 + $0x150] sm:$0xff]
    %v107 = vld [vmem:[#allocation2 + $0x158] sm:$0xff]
    %v108 = vld [vmem:[#allocation2 + $0x160] sm:$0xff]
    %v109 = vld [vmem:[#allocation2 + $0x168] sm:$0xff]
    %v110 = vld [vmem:[#allocation2 + $0x170] sm:$0xff]
    %v111 = vld [vmem:[#allocation2 + $0x178] sm:$0xff]
    %v112 = vld [vmem:[#allocation2 + $0x180] sm:$0xff]
    %v113 = vld [vmem:[#allocation2 + $0x188] sm:$0xff]
    %v114 = vld [vmem:[#allocation2 + $0x190] sm:$0xff]
    %v115 = vld [vmem:[#allocation2 + $0x198] sm:$0xff]
    %v116 = vld [vmem:[#allocation2 + $0x1a0] sm:$0xff]
    %v117 = vld [vmem:[#allocation2 + $0x1a8] sm:$0xff]
    %v118 = vld [vmem:[#allocation2 + $0x1b0] sm:$0xff]
    %v119 = vld [vmem:[#allocation2 + $0x1b8] sm:$0xff]
    %v120 = vld [vmem:[#allocation2 + $0x1c0] sm:$0xff]
    %v121 = vld [vmem:[#allocation2 + $0x1c8] sm:$0xff]
    %v122 = vld [vmem:[#allocation2 + $0x1d0] sm:$0xff]
    %v123 = vld [vmem:[#allocation2 + $0x1d8] sm:$0xff]
    %v124 = vld [vmem:[#allocation2 + $0x1e0] sm:$0xff]
    %v125 = vld [vmem:[#allocation2 + $0x1e8] sm:$0xff]
    %v126 = vld [vmem:[#allocation2 + $0x1f0] sm:$0xff]
    %v127 = vld [vmem:[#allocation2 + $0x1f8] sm:$0xff]
    %v128 = vld [vmem:[#allocation2 + $0x200] sm:$0xff]
    %v129 = vld [vmem:[#allocation2 + $0x208] sm:$0xff]
    %v130 = vld [vmem:[#allocation2 + $0x210] sm:$0xff]
    %v131 = vld [vmem:[#allocation2 + $0x218] sm:$0xff]
    %v132 = vld [vmem:[#allocation2 + $0x220] sm:$0xff]
    %v133 = vld [vmem:[#allocation2 + $0x228] sm:$0xff]
    %v134 = vld [vmem:[#allocation2 + $0x230] sm:$0xff]
    %v135 = vld [vmem:[#allocation2 + $0x238] sm:$0xff]
    %v136 = vld [vmem:[#allocation2 + $0x240] sm:$0xff]
    %v137 = vld [vmem:[#allocation2 + $0x248] sm:$0xff]
    %v138 = vld [vmem:[#allocation2 + $0x250] sm:$0xff]
    %v139 = vld [vmem:[#allocation2 + $0x258] sm:$0xff]
    %v140 = vld [vmem:[#allocation2 + $0x260] sm:$0xff]
    %v141 = vld [vmem:[#allocation2 + $0x268] sm:$0xff]
    %v142 = vld [vmem:[#allocation2 + $0x270] sm:$0xff]
    %v143 = vld [vmem:[#allocation2 + $0x278] sm:$0xff]
    %v144 = vld [vmem:[#allocation2 + $0x280] sm:$0xff]
    %v145 = vld [vmem:[#allocation2 + $0x288] sm:$0xff]
    %v146 = vld [vmem:[#allocation2 + $0x290] sm:$0xff]
    %v147 = vld [vmem:[#allocation2 + $0x298] sm:$0xff]
    %v148 = vld [vmem:[#allocation2 + $0x2a0] sm:$0xff]
    %v149 = vld [vmem:[#allocation2 + $0x2a8] sm:$0xff]
    %v150 = vld [vmem:[#allocation2 + $0x2b0] sm:$0xff]
    %v151 = vld [vmem:[#allocation2 + $0x2b8] sm:$0xff]
    %v152 = vld [vmem:[#allocation2 + $0x2c0] sm:$0xff]
    %v153 = vld [vmem:[#allocation2 + $0x2c8] sm:$0xff]
    %v154 = vld [vmem:[#allocation2 + $0x2d0] sm:$0xff]
    %v155 = vld [vmem:[#allocation2 + $0x2d8] sm:$0xff]
    %v156 = vld [vmem:[#allocation2 + $0x2e0] sm:$0xff]
    %v157 = vld [vmem:[#allocation2 + $0x2e8] sm:$0xff]
    %v158 = vld [vmem:[#allocation2 + $0x2f0] sm:$0xff]
    %v159 = vld [vmem:[#allocation2 + $0x2f8] sm:$0xff]
    %v160 = vld [vmem:[#allocation2 + $0x300] sm:$0xff]
    %v161 = vld [vmem:[#allocation2 + $0x308] sm:$0xff]
    %v162 = vld [vmem:[#allocation2 + $0x310] sm:$0xff]
    %v163 = vld [vmem:[#allocation2 + $0x318] sm:$0xff]
    %v164 = vld [vmem:[#allocation2 + $0x320] sm:$0xff]
    %v165 = vld [vmem:[#allocation2 + $0x328] sm:$0xff]
    %v166 = vld [vmem:[#allocation2 + $0x330] sm:$0xff]
    %v167 = vld [vmem:[#allocation2 + $0x338] sm:$0xff]
    %v168 = vld [vmem:[#allocation2 + $0x340] sm:$0xff]
    %v169 = vld [vmem:[#allocation2 + $0x348] sm:$0xff]
    %v170 = vld [vmem:[#allocation2 + $0x350] sm:$0xff]
    %v171 = vld [vmem:[#allocation2 + $0x358] sm:$0xff]
    %v172 = vld [vmem:[#allocation2 + $0x360] sm:$0xff]
    %v173 = vld [vmem:[#allocation2 + $0x368] sm:$0xff]
    %v174 = vld [vmem:[#allocation2 + $0x370] sm:$0xff]
    %v175 = vld [vmem:[#allocation2 + $0x378] sm:$0xff]
    %v176 = vld [vmem:[#allocation2 + $0x380] sm:$0xff]
    %v177 = vld [vmem:[#allocation2 + $0x388] sm:$0xff]
    %v178 = vld [vmem:[#allocation2 + $0x390] sm:$0xff]
    %v179 = vld [vmem:[#allocation2 + $0x398] sm:$0xff]
    %v180 = vld [vmem:[#allocation2 + $0x3a0] sm:$0xff]
    %v181 = vld [vmem:[#allocation2 + $0x3a8] sm:$0xff]
    %v182 = vld [vmem:[#allocation2 + $0x3b0] sm:$0xff]
    %v183 = vld [vmem:[#allocation2 + $0x3b8] sm:$0xff]
    %v184 = vld [vmem:[#allocation2 + $0x3c0] sm:$0xff]
    %v185 = vld [vmem:[#allocation2 + $0x3c8] sm:$0xff]
    %v186 = vld [vmem:[#allocation2 + $0x3d0] sm:$0xff]
    %v187 = vld [vmem:[#allocation2 + $0x3d8] sm:$0xff]
    %v188 = vld [vmem:[#allocation2 + $0x3e0] sm:$0xff]
    %v189 = vld [vmem:[#allocation2 + $0x3e8] sm:$0xff]
    %v190 = vld [vmem:[#allocation2 + $0x3f0] sm:$0xff]
    %v191 = vld [vmem:[#allocation2 + $0x3f8] sm:$0xff]
    %192 = vmatprep.subr.mxu0 0.0
    %193 = vmatpush1.msra.mxu0 %v79
    %194 = vmatprep.subr.mxu0 0.0
    %195 = vmatpush1.msra.mxu0 %v78
    %196 = vmatprep.subr.mxu0 0.0
    %197 = vmatpush1.msra.mxu0 %v77
    %198 = vmatprep.subr.mxu0 0.0
    %199 = vmatpush1.msra.mxu0 %v76
    %200 = vmatprep.subr.mxu0 0.0
    %201 = vmatpush1.msra.mxu0 %v75
    %202 = vmatprep.subr.mxu0 0.0
    %203 = vmatpush1.msra.mxu0 %v74
    %204 = vmatprep.subr.mxu0 0.0
    %205 = vmatpush1.msra.mxu0 %v73
    %206 = vmatprep.subr.mxu0 0.0
    %207 = vmatpush1.msra.mxu0 %v72
    %208 = vmatprep.subr.mxu0 0.0
    %209 = vmatpush1.msra.mxu0 %v71
    %210 = vmatprep.subr.mxu0 0.0
    %211 = vmatpush1.msra.mxu0 %v70
    %212 = vmatprep.subr.mxu0 0.0
    %213 = vmatpush1.msra.mxu0 %v69
    %214 = vmatprep.subr.mxu0 0.0
    %215 = vmatpush1.msra.mxu0 %v68
    %216 = vmatprep.subr.mxu0 0.0
    %217 = vmatpush1.msra.mxu0 %v67
    %218 = vmatprep.subr.mxu0 0.0
    %219 = vmatpush1.msra.mxu0 %v66
    %220 = vmatprep.subr.mxu0 0.0
    %221 = vmatpush1.msra.mxu0 %v65
    %222 = vmatprep.subr.mxu0 0.0
    %223 = vmatpush1.msra.mxu0 %v64
    %224 = vmatprep.subr.mxu0 0.0
    %225 = vmatpush2.msra.mxu0 %v95
    %226 = vmatprep.subr.mxu0 0.0
    %227 = vmatpush2.msra.mxu0 %v94
    %228 = vmatprep.subr.mxu0 0.0
    %229 = vmatpush2.msra.mxu0 %v93
    %230 = vmatprep.subr.mxu0 0.0
    %231 = vmatpush2.msra.mxu0 %v92
    %232 = vmatprep.subr.mxu0 0.0
    %233 = vmatpush2.msra.mxu0 %v91
    %234 = vmatprep.subr.mxu0 0.0
    %235 = vmatpush2.msra.mxu0 %v90
    %236 = vmatprep.subr.mxu0 0.0
    %237 = vmatpush2.msra.mxu0 %v89
    %238 = vmatprep.subr.mxu0 0.0
    %239 = vmatpush2.msra.mxu0 %v88
    %240 = vmatprep.subr.mxu0 0.0
    %241 = vmatpush2.msra.mxu0 %v87
    %242 = vmatprep.subr.mxu0 0.0
    %243 = vmatpush2.msra.mxu0 %v86
    %244 = vmatprep.subr.mxu0 0.0
    %245 = vmatpush2.msra.mxu0 %v85
    %246 = vmatprep.subr.mxu0 0.0
    %247 = vmatpush2.msra.mxu0 %v84
    %248 = vmatprep.subr.mxu0 0.0
    %249 = vmatpush2.msra.mxu0 %v83
    %250 = vmatprep.subr.mxu0 0.0
    %251 = vmatpush2.msra.mxu0 %v82
    %252 = vmatprep.subr.mxu0 0.0
    %253 = vmatpush2.msra.mxu0 %v81
    %254 = vmatprep.subr.mxu0 0.0
    %255 = vmatpush2.msra.mxu0 %v80
    %256 = vmatprep.mubr.f32.mxu0 %v57
    %257 = vmatmul.mubr.f32.gmra.mxu0 %v56
    %v258 = vpop.f32.mrf.mxu0
    %v259 = vadd.f32 0.0, %v258
    %v260 = vpop.f32.mrf.mxu0
    %261 = vdwg.mxu0
    %262 = vmatprep.subr.mxu0 0.0
    %263 = vmatpush1.msra.mxu0 %v111
    %264 = vmatprep.subr.mxu0 0.0
    %265 = vmatpush1.msra.mxu0 %v110
    %266 = vmatprep.subr.mxu0 0.0
    %267 = vmatpush1.msra.mxu0 %v109
    %268 = vmatprep.subr.mxu0 0.0
    %269 = vmatpush1.msra.mxu0 %v108
    %270 = vmatprep.subr.mxu0 0.0
    %271 = vmatpush1.msra.mxu0 %v107
    %272 = vmatprep.subr.mxu0 0.0
    %273 = vmatpush1.msra.mxu0 %v106
    %274 = vmatprep.subr.mxu0 0.0
    %275 = vmatpush1.msra.mxu0 %v105
    %276 = vmatprep.subr.mxu0 0.0
    %277 = vmatpush1.msra.mxu0 %v104
    %278 = vmatprep.subr.mxu0 0.0
    %279 = vmatpush1.msra.mxu0 %v103
    %280 = vmatprep.subr.mxu0 0.0
    %281 = vmatpush1.msra.mxu0 %v102
    %282 = vmatprep.subr.mxu0 0.0
    %283 = vmatpush1.msra.mxu0 %v101
    %284 = vmatprep.subr.mxu0 0.0
    %285 = vmatpush1.msra.mxu0 %v100
    %286 = vmatprep.subr.mxu0 0.0
    %287 = vmatpush1.msra.mxu0 %v99
    %288 = vmatprep.subr.mxu0 0.0
    %289 = vmatpush1.msra.mxu0 %v98
    %290 = vmatprep.subr.mxu0 0.0
    %291 = vmatpush1.msra.mxu0 %v97
    %292 = vmatprep.subr.mxu0 0.0
    %293 = vmatpush1.msra.mxu0 %v96
    %294 = vmatprep.subr.mxu0 0.0
    %295 = vmatpush2.msra.mxu0 %v127
    %296 = vmatprep.subr.mxu0 0.0
    %297 = vmatpush2.msra.mxu0 %v126
    %298 = vmatprep.subr.mxu0 0.0
    %299 = vmatpush2.msra.mxu0 %v125
    %300 = vmatprep.subr.mxu0 0.0
    %301 = vmatpush2.msra.mxu0 %v124
    %302 = vmatprep.subr.mxu0 0.0
    %303 = vmatpush2.msra.mxu0 %v123
    %304 = vmatprep.subr.mxu0 0.0
    %305 = vmatpush2.msra.mxu0 %v122
    %306 = vmatprep.subr.mxu0 0.0
    %307 = vmatpush2.msra.mxu0 %v121
    %308 = vmatprep.subr.mxu0 0.0
    %309 = vmatpush2.msra.mxu0 %v120
    %310 = vmatprep.subr.mxu0 0.0
    %311 = vmatpush2.msra.mxu0 %v119
    %312 = vmatprep.subr.mxu0 0.0
    %313 = vmatpush2.msra.mxu0 %v118
    %314 = vmatprep.subr.mxu0 0.0
    %315 = vmatpush2.msra.mxu0 %v117
    %316 = vmatprep.subr.mxu0 0.0
    %317 = vmatpush2.msra.mxu0 %v116
    %318 = vmatprep.subr.mxu0 0.0
    %319 = vmatpush2.msra.mxu0 %v115
    %320 = vmatprep.subr.mxu0 0.0
    %321 = vmatpush2.msra.mxu0 %v114
    %322 = vmatprep.subr.mxu0 0.0
    %323 = vmatpush2.msra.mxu0 %v113
    %324 = vmatprep.subr.mxu0 0.0
    %325 = vmatpush2.msra.mxu0 %v112
    %326 = vmatprep.mubr.f32.mxu0 %v59
    %327 = vmatmul.mubr.f32.gmra.mxu0 %v58
    %v328 = vpop.f32.mrf.mxu0
    %v329 = vadd.f32 %v259, %v328
    %v330 = vpop.f32.mrf.mxu0
    %331 = vdwg.mxu0
    %332 = vmatprep.subr.mxu0 0.0
    %333 = vmatpush1.msra.mxu0 %v143
    %334 = vmatprep.subr.mxu0 0.0
    %335 = vmatpush1.msra.mxu0 %v142
    %336 = vmatprep.subr.mxu0 0.0
    %337 = vmatpush1.msra.mxu0 %v141
    %338 = vmatprep.subr.mxu0 0.0
    %339 = vmatpush1.msra.mxu0 %v140
    %340 = vmatprep.subr.mxu0 0.0
    %341 = vmatpush1.msra.mxu0 %v139
    %342 = vmatprep.subr.mxu0 0.0
    %343 = vmatpush1.msra.mxu0 %v138
    %344 = vmatprep.subr.mxu0 0.0
    %345 = vmatpush1.msra.mxu0 %v137
    %346 = vmatprep.subr.mxu0 0.0
    %347 = vmatpush1.msra.mxu0 %v136
    %348 = vmatprep.subr.mxu0 0.0
    %349 = vmatpush1.msra.mxu0 %v135
    %350 = vmatprep.subr.mxu0 0.0
    %351 = vmatpush1.msra.mxu0 %v134
    %352 = vmatprep.subr.mxu0 0.0
    %353 = vmatpush1.msra.mxu0 %v133
    %354 = vmatprep.subr.mxu0 0.0
    %355 = vmatpush1.msra.mxu0 %v132
    %356 = vmatprep.subr.mxu0 0.0
    %357 = vmatpush1.msra.mxu0 %v131
    %358 = vmatprep.subr.mxu0 0.0
    %359 = vmatpush1.msra.mxu0 %v130
    %360 = vmatprep.subr.mxu0 0.0
    %361 = vmatpush1.msra.mxu0 %v129
    %362 = vmatprep.subr.mxu0 0.0
    %363 = vmatpush1.msra.mxu0 %v128
    %364 = vmatprep.subr.mxu0 0.0
    %365 = vmatpush2.msra.mxu0 %v159
    %366 = vmatprep.subr.mxu0 0.0
    %367 = vmatpush2.msra.mxu0 %v158
    %368 = vmatprep.subr.mxu0 0.0
    %369 = vmatpush2.msra.mxu0 %v157
    %370 = vmatprep.subr.mxu0 0.0
    %371 = vmatpush2.msra.mxu0 %v156
    %372 = vmatprep.subr.mxu0 0.0
    %373 = vmatpush2.msra.mxu0 %v155
    %374 = vmatprep.subr.mxu0 0.0
    %375 = vmatpush2.msra.mxu0 %v154
    %376 = vmatprep.subr.mxu0 0.0
    %377 = vmatpush2.msra.mxu0 %v153
    %378 = vmatprep.subr.mxu0 0.0
    %379 = vmatpush2.msra.mxu0 %v152
    %380 = vmatprep.subr.mxu0 0.0
    %381 = vmatpush2.msra.mxu0 %v151
    %382 = vmatprep.subr.mxu0 0.0
    %383 = vmatpush2.msra.mxu0 %v150
    %384 = vmatprep.subr.mxu0 0.0
    %385 = vmatpush2.msra.mxu0 %v149
    %386 = vmatprep.subr.mxu0 0.0
    %387 = vmatpush2.msra.mxu0 %v148
    %388 = vmatprep.subr.mxu0 0.0
    %389 = vmatpush2.msra.mxu0 %v147
    %390 = vmatprep.subr.mxu0 0.0
    %391 = vmatpush2.msra.mxu0 %v146
    %392 = vmatprep.subr.mxu0 0.0
    %393 = vmatpush2.msra.mxu0 %v145
    %394 = vmatprep.subr.mxu0 0.0
    %395 = vmatpush2.msra.mxu0 %v144
    %396 = vmatprep.mubr.f32.mxu0 %v61
    %397 = vmatmul.mubr.f32.gmra.mxu0 %v60
    %v398 = vpop.f32.mrf.mxu0
    %v399 = vadd.f32 %v329, %v398
    %v400 = vpop.f32.mrf.mxu0
    %401 = vdwg.mxu0
    %402 = vmatprep.subr.mxu0 0.0
    %403 = vmatpush1.msra.mxu0 %v175
    %404 = vmatprep.subr.mxu0 0.0
    %405 = vmatpush1.msra.mxu0 %v174
    %406 = vmatprep.subr.mxu0 0.0
    %407 = vmatpush1.msra.mxu0 %v173
    %408 = vmatprep.subr.mxu0 0.0
    %409 = vmatpush1.msra.mxu0 %v172
    %410 = vmatprep.subr.mxu0 0.0
    %411 = vmatpush1.msra.mxu0 %v171
    %412 = vmatprep.subr.mxu0 0.0
    %413 = vmatpush1.msra.mxu0 %v170
    %414 = vmatprep.subr.mxu0 0.0
    %415 = vmatpush1.msra.mxu0 %v169
    %416 = vmatprep.subr.mxu0 0.0
    %417 = vmatpush1.msra.mxu0 %v168
    %418 = vmatprep.subr.mxu0 0.0
    %419 = vmatpush1.msra.mxu0 %v167
    %420 = vmatprep.subr.mxu0 0.0
    %421 = vmatpush1.msra.mxu0 %v166
    %422 = vmatprep.subr.mxu0 0.0
    %423 = vmatpush1.msra.mxu0 %v165
    %424 = vmatprep.subr.mxu0 0.0
    %425 = vmatpush1.msra.mxu0 %v164
    %426 = vmatprep.subr.mxu0 0.0
    %427 = vmatpush1.msra.mxu0 %v163
    %428 = vmatprep.subr.mxu0 0.0
    %429 = vmatpush1.msra.mxu0 %v162
    %430 = vmatprep.subr.mxu0 0.0
    %431 = vmatpush1.msra.mxu0 %v161
    %432 = vmatprep.subr.mxu0 0.0
    %433 = vmatpush1.msra.mxu0 %v160
    %434 = vmatprep.subr.mxu0 0.0
    %435 = vmatpush2.msra.mxu0 %v191
    %436 = vmatprep.subr.mxu0 0.0
    %437 = vmatpush2.msra.mxu0 %v190
    %438 = vmatprep.subr.mxu0 0.0
    %439 = vmatpush2.msra.mxu0 %v189
    %440 = vmatprep.subr.mxu0 0.0
    %441 = vmatpush2.msra.mxu0 %v188
    %442 = vmatprep.subr.mxu0 0.0
    %443 = vmatpush2.msra.mxu0 %v187
    %444 = vmatprep.subr.mxu0 0.0
    %445 = vmatpush2.msra.mxu0 %v186
    %446 = vmatprep.subr.mxu0 0.0
    %447 = vmatpush2.msra.mxu0 %v185
    %448 = vmatprep.subr.mxu0 0.0
    %449 = vmatpush2.msra.mxu0 %v184
    %450 = vmatprep.subr.mxu0 0.0
    %451 = vmatpush2.msra.mxu0 %v183
    %452 = vmatprep.subr.mxu0 0.0
    %453 = vmatpush2.msra.mxu0 %v182
    %454 = vmatprep.subr.mxu0 0.0
    %455 = vmatpush2.msra.mxu0 %v181
    %456 = vmatprep.subr.mxu0 0.0
    %457 = vmatpush2.msra.mxu0 %v180
    %458 = vmatprep.subr.mxu0 0.0
    %459 = vmatpush2.msra.mxu0 %v179
    %460 = vmatprep.subr.mxu0 0.0
    %461 = vmatpush2.msra.mxu0 %v178
    %462 = vmatprep.subr.mxu0 0.0
    %463 = vmatpush2.msra.mxu0 %v177
    %464 = vmatprep.subr.mxu0 0.0
    %465 = vmatpush2.msra.mxu0 %v176
    %466 = vmatprep.mubr.f32.mxu0 %v63
    %467 = vmatmul.mubr.f32.gmra.mxu0 %v62
    %v468 = vpop.f32.mrf.mxu0
    %v469 = vadd.f32 %v399, %v468
    %v470 = vpop.f32.mrf.mxu0
    %471 = vdwg.mxu0
    %v472 = vld [vmem:[%s2] sm:$0x1]
    %v473 = vld [vmem:[%s3] sm:$0x1]
    %v474 = vrot.slane %v469, 4
    %v475 = vadd.f32 %v469, %v474
    %v476 = vrot.slane %v475, 2
    %v477 = vadd.f32 %v475, %v476
    %v478 = vrot.slane %v477, 1
    %v479 = vadd.f32 %v477, %v478
    %v480 = vrcp.pop 8.0
    %v481 = vmul.f32 %v479, %v480
    %v482 = vsub.f32 %v469, %v481
    %v483 = vmul.f32 %v482, %v482
    %v484 = vrot.slane %v483, 4
    %v485 = vadd.f32 %v483, %v484
    %v486 = vrot.slane %v485, 2
    %v487 = vadd.f32 %v485, %v486
    %v488 = vrot.slane %v487, 1
    %v489 = vadd.f32 %v487, %v488
    %v490 = vmul.f32 %v489, %v480
    %v491 = vadd.f32 %v490, 1e-05
    %v492 = vrsqrt.pop %v491
    %v493 = vmul.f32 %v472, %v492
    %v495 = vlaneseq
    %v496 = vshrl.u32 %v495, 7
    %v497 = vsub.s32 0, %v496
    %v498 = vrot.slane %v493, %v497
    %v500 = vmul.f32 %v482, %v498
    %v502 = vlaneseq
    %v503 = vshrl.u32 %v502, 7
    %v504 = vsub.s32 0, %v503
    %v505 = vrot.slane %v473, %v504
    %v507 = vadd.f32 %v500, %v505
    %v508 = vmul.f32 %v507, 0.2
    %v509 = vmax.f32 %v507, %v508
    %v510 = vld [vmem:[%s4] sm:$0xff]
    %v511 = vld [vmem:[%s4 + $0x8] sm:$0xff]
    %v512 = vld [vmem:[%s4 + $0x10] sm:$0xff]
    %v513 = vld [vmem:[%s4 + $0x18] sm:$0xff]
    %v514 = vld [vmem:[%s4 + $0x20] sm:$0xff]
    %v515 = vld [vmem:[%s4 + $0x28] sm:$0xff]
    %v516 = vld [vmem:[%s4 + $0x30] sm:$0xff]
    %v517 = vld [vmem:[%s4 + $0x38] sm:$0xff]
    %v518 = vld [vmem:[%s4 + $0x40] sm:$0xff]
    %v519 = vld [vmem:[%s4 + $0x48] sm:$0xff]
    %v520 = vld [vmem:[%s4 + $0x50] sm:$0xff]
    %v521 = vld [vmem:[%s4 + $0x58] sm:$0xff]
    %v522 = vld [vmem:[%s4 + $0x60] sm:$0xff]
    %v523 = vld [vmem:[%s4 + $0x68] sm:$0xff]
    %v524 = vld [vmem:[%s4 + $0x70] sm:$0xff]
    %v525 = vld [vmem:[%s4 + $0x78] sm:$0xff]
    %526 = vmatprep.subr.mxu0 0.0
    %527 = vmatpush1.msra.mxu0 %v525
    %528 = vmatprep.subr.mxu0 0.0
    %529 = vmatpush1.msra.mxu0 %v524
    %530 = vmatprep.subr.mxu0 0.0
    %531 = vmatpush1.msra.mxu0 %v523
    %532 = vmatprep.subr.mxu0 0.0
    %533 = vmatpush1.msra.mxu0 %v522
    %534 = vmatprep.subr.mxu0 0.0
    %535 = vmatpush1.msra.mxu0 %v521
    %536 = vmatprep.subr.mxu0 0.0
    %537 = vmatpush1.msra.mxu0 %v520
    %538 = vmatprep.subr.mxu0 0.0
    %539 = vmatpush1.msra.mxu0 %v519
    %540 = vmatprep.subr.mxu0 0.0
    %541 = vmatpush1.msra.mxu0 %v518
    %542 = vmatprep.subr.mxu0 0.0
    %543 = vmatpush1.msra.mxu0 %v517
    %544 = vmatprep.subr.mxu0 0.0
    %545 = vmatpush1.msra.mxu0 %v516
    %546 = vmatprep.subr.mxu0 0.0
    %547 = vmatpush1.msra.mxu0 %v515
    %548 = vmatprep.subr.mxu0 0.0
    %549 = vmatpush1.msra.mxu0 %v514
    %550 = vmatprep.subr.mxu0 0.0
    %551 = vmatpush1.msra.mxu0 %v513
    %552 = vmatprep.subr.mxu0 0.0
    %553 = vmatpush1.msra.mxu0 %v512
    %554 = vmatprep.subr.mxu0 0.0
    %555 = vmatpush1.msra.mxu0 %v511
    %556 = vmatprep.subr.mxu0 0.0
    %557 = vmatpush1.msra.mxu0 %v510
    %558 = vmatprep.subr.mxu0 0.0
    %559 = vmatpush2.msra.mxu0 0.0
    %560 = vmatprep.subr.mxu0 0.0
    %561 = vmatpush2.msra.mxu0 0.0
    %562 = vmatprep.subr.mxu0 0.0
    %563 = vmatpush2.msra.mxu0 0.0
    %564 = vmatprep.subr.mxu0 0.0
    %565 = vmatpush2.msra.mxu0 0.0
    %566 = vmatprep.subr.mxu0 0.0
    %567 = vmatpush2.msra.mxu0 0.0
    %568 = vmatprep.subr.mxu0 0.0
    %569 = vmatpush2.msra.mxu0 0.0
    %570 = vmatprep.subr.mxu0 0.0
    %571 = vmatpush2.msra.mxu0 0.0
    %572 = vmatprep.subr.mxu0 0.0
    %573 = vmatpush2.msra.mxu0 0.0
    %574 = vmatprep.subr.mxu0 0.0
    %575 = vmatpush2.msra.mxu0 0.0
    %576 = vmatprep.subr.mxu0 0.0
    %577 = vmatpush2.msra.mxu0 0.0
    %578 = vmatprep.subr.mxu0 0.0
    %579 = vmatpush2.msra.mxu0 0.0
    %580 = vmatprep.subr.mxu0 0.0
    %581 = vmatpush2.msra.mxu0 0.0
    %582 = vmatprep.subr.mxu0 0.0
    %583 = vmatpush2.msra.mxu0 0.0
    %584 = vmatprep.subr.mxu0 0.0
    %585 = vmatpush2.msra.mxu0 0.0
    %586 = vmatprep.subr.mxu0 0.0
    %587 = vmatpush2.msra.mxu0 0.0
    %588 = vmatprep.subr.mxu0 0.0
    %589 = vmatpush2.msra.mxu0 0.0
    %590 = vmatprep.mubr.f32.mxu0 0.0
    %591 = vmatmul.mubr.f32.gmra.mxu0 %v509
    %v592 = vpop.f32.mrf.mxu0
    %v593 = vadd.f32 0.0, %v592
    %v594 = vpop.f32.mrf.mxu0
    %595 = vdwg.mxu0
    %v596 = vld [vmem:[%s5] sm:$0x1]
    %v597 = vld [vmem:[%s6] sm:$0x1]
    %vm598 = vcmask 523264
    %v599 = vsel %vm598, %v593, 0.0
    %v600 = vrot.slane %v599, 4
    %v601 = vadd.f32 %v599, %v600
    %v602 = vrot.slane %v601, 2
    %v603 = vadd.f32 %v601, %v602
    %v604 = vrot.slane %v603, 1
    %v605 = vadd.f32 %v603, %v604
    %v606 = vmul.f32 %v605, %v480
    %v607 = vsub.f32 %v593, %v606
    %v608 = vmul.f32 %v607, %v607
    %v609 = vsel %vm598, %v608, 0.0
    %v610 = vrot.slane %v609, 4
    %v611 = vadd.f32 %v609, %v610
    %v612 = vrot.slane %v611, 2
    %v613 = vadd.f32 %v611, %v612
    %v614 = vrot.slane %v613, 1
    %v615 = vadd.f32 %v613, %v614
    %v616 = vmul.f32 %v615, %v480
    %v617 = vadd.f32 %v616, 1e-05
    %v618 = vrsqrt.pop %v617
    %v619 = vmul.f32 %v596, %v618
    %v621 = vlaneseq
    %v622 = vshrl.u32 %v621, 7
    %v623 = vsub.s32 0, %v622
    %v624 = vrot.slane %v619, %v623
    %v626 = vmul.f32 %v607, %v624
    %v628 = vlaneseq
    %v629 = vshrl.u32 %v628, 7
    %v630 = vsub.s32 0, %v629
    %v631 = vrot.slane %v597, %v630
    %v633 = vadd.f32 %v626, %v631
    %v634 = vmul.f32 %v633, 0.2
    %v635 = vmax.f32 %v633, %v634
    %v636 = vld [vmem:[%s7] sm:$0xff]
    %v637 = vld [vmem:[%s7 + $0x8] sm:$0xff]
    %v638 = vld [vmem:[%s7 + $0x10] sm:$0xff]
    %v639 = vld [vmem:[%s7 + $0x18] sm:$0xff]
    %v640 = vld [vmem:[%s7 + $0x20] sm:$0xff]
    %v641 = vld [vmem:[%s7 + $0x28] sm:$0xff]
    %v642 = vld [vmem:[%s7 + $0x30] sm:$0xff]
    %v643 = vld [vmem:[%s7 + $0x38] sm:$0xff]
    %v645 = vsel %vm598, %v635, 0
    %647 = vmatprep.subr.mxu0 0.0
    %648 = vmatpush1.msra.mxu0 0.0
    %649 = vmatprep.subr.mxu0 0.0
    %650 = vmatpush1.msra.mxu0 0.0
    %651 = vmatprep.subr.mxu0 0.0
    %652 = vmatpush1.msra.mxu0 0.0
    %653 = vmatprep.subr.mxu0 0.0
    %654 = vmatpush1.msra.mxu0 0.0
    %655 = vmatprep.subr.mxu0 0.0
    %656 = vmatpush1.msra.mxu0 0.0
    %657 = vmatprep.subr.mxu0 0.0
    %658 = vmatpush1.msra.mxu0 0.0
    %659 = vmatprep.subr.mxu0 0.0
    %660 = vmatpush1.msra.mxu0 0.0
    %661 = vmatprep.subr.mxu0 0.0
    %662 = vmatpush1.msra.mxu0 0.0
    %663 = vmatprep.subr.mxu0 0.0
    %664 = vmatpush1.msra.mxu0 %v643
    %665 = vmatprep.subr.mxu0 0.0
    %666 = vmatpush1.msra.mxu0 %v642
    %667 = vmatprep.subr.mxu0 0.0
    %668 = vmatpush1.msra.mxu0 %v641
    %669 = vmatprep.subr.mxu0 0.0
    %670 = vmatpush1.msra.mxu0 %v640
    %671 = vmatprep.subr.mxu0 0.0
    %672 = vmatpush1.msra.mxu0 %v639
    %673 = vmatprep.subr.mxu0 0.0
    %674 = vmatpush1.msra.mxu0 %v638
    %675 = vmatprep.subr.mxu0 0.0
    %676 = vmatpush1.msra.mxu0 %v637
    %677 = vmatprep.subr.mxu0 0.0
    %678 = vmatpush1.msra.mxu0 %v636
    %679 = vmatprep.subr.mxu0 0.0
    %680 = vmatpush2.msra.mxu0 0.0
    %681 = vmatprep.subr.mxu0 0.0
    %682 = vmatpush2.msra.mxu0 0.0
    %683 = vmatprep.subr.mxu0 0.0
    %684 = vmatpush2.msra.mxu0 0.0
    %685 = vmatprep.subr.mxu0 0.0
    %686 = vmatpush2.msra.mxu0 0.0
    %687 = vmatprep.subr.mxu0 0.0
    %688 = vmatpush2.msra.mxu0 0.0
    %689 = vmatprep.subr.mxu0 0.0
    %690 = vmatpush2.msra.mxu0 0.0
    %691 = vmatprep.subr.mxu0 0.0
    %692 = vmatpush2.msra.mxu0 0.0
    %693 = vmatprep.subr.mxu0 0.0
    %694 = vmatpush2.msra.mxu0 0.0
    %695 = vmatprep.subr.mxu0 0.0
    %696 = vmatpush2.msra.mxu0 0.0
    %697 = vmatprep.subr.mxu0 0.0
    %698 = vmatpush2.msra.mxu0 0.0
    %699 = vmatprep.subr.mxu0 0.0
    %700 = vmatpush2.msra.mxu0 0.0
    %701 = vmatprep.subr.mxu0 0.0
    %702 = vmatpush2.msra.mxu0 0.0
    %703 = vmatprep.subr.mxu0 0.0
    %704 = vmatpush2.msra.mxu0 0.0
    %705 = vmatprep.subr.mxu0 0.0
    %706 = vmatpush2.msra.mxu0 0.0
    %707 = vmatprep.subr.mxu0 0.0
    %708 = vmatpush2.msra.mxu0 0.0
    %709 = vmatprep.subr.mxu0 0.0
    %710 = vmatpush2.msra.mxu0 0.0
    %711 = vmatprep.mubr.f32.mxu0 0.0
    %712 = vmatmul.mubr.f32.gmra.mxu0 %v645
    %v713 = vpop.f32.mrf.mxu0
    %v714 = vadd.f32 0.0, %v713
    %v715 = vpop.f32.mrf.mxu0
    %716 = vdwg.mxu0
    %v717 = vld [vmem:[%s8] sm:$0x1]
    %v718 = vld [vmem:[%s9] sm:$0x1]
    %vm719 = vcmask 261120
    %v720 = vsel %vm719, %v714, 0.0
    %v721 = vrot.slane %v720, 4
    %v722 = vadd.f32 %v720, %v721
    %v723 = vrot.slane %v722, 2
    %v724 = vadd.f32 %v722, %v723
    %v725 = vrot.slane %v724, 1
    %v726 = vadd.f32 %v724, %v725
    %v727 = vmul.f32 %v726, %v480
    %v728 = vsub.f32 %v714, %v727
    %v729 = vmul.f32 %v728, %v728
    %v730 = vsel %vm719, %v729, 0.0
    %v731 = vrot.slane %v730, 4
    %v732 = vadd.f32 %v730, %v731
    %v733 = vrot.slane %v732, 2
    %v734 = vadd.f32 %v732, %v733
    %v735 = vrot.slane %v734, 1
    %v736 = vadd.f32 %v734, %v735
    %v737 = vmul.f32 %v736, %v480
    %v738 = vadd.f32 %v737, 1e-05
    %v739 = vrsqrt.pop %v738
    %v740 = vmul.f32 %v717, %v739
    %v742 = vlaneseq
    %v743 = vshrl.u32 %v742, 7
    %v744 = vsub.s32 0, %v743
    %v745 = vrot.slane %v740, %v744
    %v747 = vmul.f32 %v728, %v745
    %v749 = vlaneseq
    %v750 = vshrl.u32 %v749, 7
    %v751 = vsub.s32 0, %v750
    %v752 = vrot.slane %v718, %v751
    %v754 = vadd.f32 %v747, %v752
    %v755 = vmul.f32 %v754, 0.2
    %v756 = vmax.f32 %v754, %v755
    %v757 = vld [vmem:[%s10] sm:$0xff]
    %v758 = vld [vmem:[%s10 + $0x8] sm:$0xff]
    %v759 = vld [vmem:[%s10 + $0x10] sm:$0xff]
    %v760 = vld [vmem:[%s10 + $0x18] sm:$0xff]
    %v761 = vld [vmem:[%s11] sm:$0x1]
    %v763 = vlaneseq
    %v764 = vshrl.u32 %v763, 7
    %v765 = vsub.s32 0, %v764
    %v766 = vrot.slane %v761, %v765
    %v769 = vsel %vm719, %v756, 0
    %771 = vmatprep.subr.mxu0 0.0
    %772 = vmatpush1.msra.mxu0 0.0
    %773 = vmatprep.subr.mxu0 0.0
    %774 = vmatpush1.msra.mxu0 0.0
    %775 = vmatprep.subr.mxu0 0.0
    %776 = vmatpush1.msra.mxu0 0.0
    %777 = vmatprep.subr.mxu0 0.0
    %778 = vmatpush1.msra.mxu0 0.0
    %779 = vmatprep.subr.mxu0 0.0
    %780 = vmatpush1.msra.mxu0 0.0
    %781 = vmatprep.subr.mxu0 0.0
    %782 = vmatpush1.msra.mxu0 0.0
    %783 = vmatprep.subr.mxu0 0.0
    %784 = vmatpush1.msra.mxu0 0.0
    %785 = vmatprep.subr.mxu0 0.0
    %786 = vmatpush1.msra.mxu0 0.0
    %787 = vmatprep.subr.mxu0 0.0
    %788 = vmatpush1.msra.mxu0 0.0
    %789 = vmatprep.subr.mxu0 0.0
    %790 = vmatpush1.msra.mxu0 0.0
    %791 = vmatprep.subr.mxu0 0.0
    %792 = vmatpush1.msra.mxu0 0.0
    %793 = vmatprep.subr.mxu0 0.0
    %794 = vmatpush1.msra.mxu0 0.0
    %795 = vmatprep.subr.mxu0 0.0
    %796 = vmatpush1.msra.mxu0 %v760
    %797 = vmatprep.subr.mxu0 0.0
    %798 = vmatpush1.msra.mxu0 %v759
    %799 = vmatprep.subr.mxu0 0.0
    %800 = vmatpush1.msra.mxu0 %v758
    %801 = vmatprep.subr.mxu0 0.0
    %802 = vmatpush1.msra.mxu0 %v757
    %803 = vmatprep.subr.mxu0 0.0
    %804 = vmatpush2.msra.mxu0 0.0
    %805 = vmatprep.subr.mxu0 0.0
    %806 = vmatpush2.msra.mxu0 0.0
    %807 = vmatprep.subr.mxu0 0.0
    %808 = vmatpush2.msra.mxu0 0.0
    %809 = vmatprep.subr.mxu0 0.0
    %810 = vmatpush2.msra.mxu0 0.0
    %811 = vmatprep.subr.mxu0 0.0
    %812 = vmatpush2.msra.mxu0 0.0
    %813 = vmatprep.subr.mxu0 0.0
    %814 = vmatpush2.msra.mxu0 0.0
    %815 = vmatprep.subr.mxu0 0.0
    %816 = vmatpush2.msra.mxu0 0.0
    %817 = vmatprep.subr.mxu0 0.0
    %818 = vmatpush2.msra.mxu0 0.0
    %819 = vmatprep.subr.mxu0 0.0
    %820 = vmatpush2.msra.mxu0 0.0
    %821 = vmatprep.subr.mxu0 0.0
    %822 = vmatpush2.msra.mxu0 0.0
    %823 = vmatprep.subr.mxu0 0.0
    %824 = vmatpush2.msra.mxu0 0.0
    %825 = vmatprep.subr.mxu0 0.0
    %826 = vmatpush2.msra.mxu0 0.0
    %827 = vmatprep.subr.mxu0 0.0
    %828 = vmatpush2.msra.mxu0 0.0
    %829 = vmatprep.subr.mxu0 0.0
    %830 = vmatpush2.msra.mxu0 0.0
    %831 = vmatprep.subr.mxu0 0.0
    %832 = vmatpush2.msra.mxu0 0.0
    %833 = vmatprep.subr.mxu0 0.0
    %834 = vmatpush2.msra.mxu0 0.0
    %835 = vmatprep.mubr.f32.mxu0 0.0
    %836 = vmatmul.mubr.f32.gmra.mxu0 %v769
    %v837 = vpop.f32.mrf.mxu0
    %v838 = vadd.f32 %v766, %v837
    %v839 = vpop.f32.mrf.mxu0
    %840 = vdwg.mxu0
    %841 = vst [vmem:[#allocation5] sm:$0xff] %v838
    // Predicated region
    $region54: #{tpu_custom_call.1} parent=1 // pred_check
      _
    $region55: #{tpu_custom_call.1} parent=1 // pred_check_branch
      %843 = sbr.rel (0) target = $region57
    $region56: #{tpu_custom_call.1} parent=1 // pred_region
      %s845 = ssub.s32 128, 128
      %846 = vsyncadd [#allocation4], %s845
      %s848 = sshll.u32 [#allocation5], 4
      %s849 = int_to_ptr.vmem [resolvable:$true] %s848
      %851 = dma.vmem_to_hbm [thread:$0]  %s849, 128, %s12, [#allocation4]
    $region57: #{tpu_custom_call.1} parent=1 // pred_fallthru
      _
    // Predicated region
    $region58: #{tpu_custom_call.1} parent=1 // pred_check
      _
    $region59: #{tpu_custom_call.1} parent=1 // pred_check_branch
      %853 = sbr.rel (0) target = $region61
    $region60: #{tpu_custom_call.1} parent=1 // pred_region
      %854 = dma.done [#allocation4], 128
    $region61: #{tpu_custom_call.1} parent=1 // pred_fallthru
      _
    %855 = vsyncpa [#allocation3], 1
    %856 = vsyncpa [#allocation4], 1

</llo_original>
